<compile_context>
chip_gen: v6e
topology: v6e:2x2x1
jax: 0.10.0
libtpu: 0.0.40
codegen_flags: <defaults>
</compile_context>

<pallas_src>
import functools

import jax
import jax.numpy as jnp
import numpy as np
from jax import lax
from jax.experimental import pallas as pl
from jax.experimental.pallas import tpu as pltpu


def _round_up(v, m):
    return (v + m - 1) // m * m


def _linear_head_kernel(*refs, pool_type, hw_total, hw_tile):
    """Grid: (batch-tile index i, spatial-tile index k).

    refs (avg/max): x_ref (TB,C,THW), w_ref (N,C),              b_ref (1,N), o_ref (TB,N), sum_ref, max_ref
    refs (cat):     x_ref (TB,C,THW), wa_ref (N,C), wm_ref (N,C), b_ref (1,N), o_ref (TB,N), sum_ref, max_ref
    """
    if pool_type == "cat":
        x_ref, wa_ref, wm_ref, b_ref, o_ref, sum_ref, max_ref = refs
    else:
        x_ref, w_ref, b_ref, o_ref, sum_ref, max_ref = refs
        wa_ref = wm_ref = w_ref

    need_sum = pool_type in ("avg", "cat")
    need_max = pool_type in ("max", "cat")

    k = pl.program_id(1)
    nk = pl.num_programs(1)

    @pl.when(k == 0)
    def _init():
        if need_sum:
            sum_ref[...] = jnp.zeros_like(sum_ref)
        if need_max:
            max_ref[...] = jnp.full_like(max_ref, -jnp.inf)

    # Accept bf16/fp16 activations; accumulate in f32 (on v5e the VPU has no bf16 path
    # anyway, so the upcast sits in VALU slack while the kernel is DMA-bound).
    x = x_ref[...].astype(jnp.float32)                      # (TB, C, THW)

    # Mask out-of-range spatial lanes when the spatial extent isn't a tile multiple.
    if hw_total % hw_tile != 0:
        valid = jnp.minimum(hw_total - k * hw_tile, hw_tile)
        lane = lax.broadcasted_iota(jnp.int32, x.shape, dimension=2)
        in_bounds = lane < valid
    else:
        in_bounds = None

    if need_sum:
        xs = x if in_bounds is None else jnp.where(in_bounds, x, 0.0)
        sum_ref[...] += jnp.sum(xs, axis=-1)                # (TB, C)
    if need_max:
        xm = x if in_bounds is None else jnp.where(in_bounds, x, -jnp.inf)
        max_ref[...] = jnp.maximum(max_ref[...], jnp.max(xm, axis=-1))

    @pl.when(k == nk - 1)
    def _finalize():
        # Contract pooled (TB, C) with weight (N, C) along C: the weight is consumed
        # in nn.Linear layout directly (no wrapper-side transpose copy in HBM).
        dn = (((1,), (1,)), ((), ()))
        if pool_type == "avg":
            pooled = sum_ref[...] * (1.0 / hw_total)
            out = lax.dot_general(pooled, wa_ref[...].astype(jnp.float32), dn,
                                  preferred_element_type=jnp.float32)
        elif pool_type == "max":
            out = lax.dot_general(max_ref[...], wa_ref[...].astype(jnp.float32), dn,
                                  preferred_element_type=jnp.float32)
        else:  # cat: avg @ W[:, :C].T + max @ W[:, C:].T  (no lane-axis concatenate)
            pooled = sum_ref[...] * (1.0 / hw_total)
            out = lax.dot_general(pooled, wa_ref[...].astype(jnp.float32), dn,
                                  preferred_element_type=jnp.float32)
            out = out + lax.dot_general(max_ref[...], wm_ref[...].astype(jnp.float32), dn,
                                        preferred_element_type=jnp.float32)
        o_ref[...] = (out + b_ref[...]).astype(o_ref.dtype)


def _choose_tiles(batch, channels, hw, num_classes, f_eff, x_itemsize, vmem_budget_bytes):
    """Pick (batch_tile, hw_tile).

    batch_tile is the full batch or a multiple of 8 (keeps the (TB, N) output block
    sublane-aligned); hw_tile is the full spatial extent or a multiple of 128 (lane
    aligned). Sized so 2x-buffered x tiles + resident weight/bias fit the VMEM budget.
    """
    c_sl = _round_up(channels, 8)        # sublane-padded channel extent
    hw_ln = _round_up(hw, 128)           # lane-padded spatial extent
    # Resident params (counted x2 in case the pipeline double-buffers them), f32.
    resident = 2 * (_round_up(num_classes, 8) * _round_up(f_eff, 128)
                    + 8 * _round_up(num_classes, 128)) * 4
    min_need = 2 * min(batch, 8) * c_sl * 128 * x_itemsize
    avail = max(vmem_budget_bytes - resident, min_need)

    row_bytes = c_sl * hw_ln * x_itemsize            # one batch row, full spatial extent
    max_tb = avail // (2 * row_bytes)                # 2x: double buffering
    if max_tb >= batch:
        return batch, hw
    if max_tb >= 8:
        return int((max_tb // 8) * 8), hw
    # Even a small batch tile at full spatial extent doesn't fit: fix the batch tile
    # and tile the spatial (reduction) axis instead.
    tb = min(batch, 8)
    lanes = avail // (2 * tb * c_sl * x_itemsize)
    thw = min(max(128, int(lanes // 128) * 128), hw_ln)
    return tb, thw


def linear_head_forward(x_nchw, weight, bias, pool_type="avg", *,
                        batch_tile=None, hw_tile=None,
                        vmem_budget_bytes=22 * 1024 * 1024):
    """LinearHead forward: pool(x) @ weight.T + bias.

    x_nchw : (B, C, H, W) float32/bfloat16
    weight : (num_classes, F) nn.Linear layout; F = C for 'avg'/'max', 2C for 'cat'
    bias   : (num_classes,)
    """
    B, C, H, W = x_nchw.shape
    num_classes, f_eff = weight.shape
    HW = H * W

    if pool_type in ("avg", "max"):
        if f_eff != C:
            raise ValueError(f"weight has {f_eff} in-features, expected C={C}")
        w_parts = (weight,)
    elif pool_type == "cat":
        if f_eff != 2 * C:
            raise ValueError(f"'cat' weight has {f_eff} in-features, expected 2C={2 * C}")
        # Split into avg / max halves so the kernel never concatenates on the lane axis.
        w_parts = (weight[:, :C], weight[:, C:])
    else:
        raise ValueError(f"unknown pool_type {pool_type!r}")

    x_flat = x_nchw.reshape(B, C, HW)
    b2 = bias.reshape(1, num_classes).astype(jnp.float32)

    tb_auto, thw_auto = _choose_tiles(B, C, HW, num_classes, f_eff,
                                      x_flat.dtype.itemsize, vmem_budget_bytes)
    tb = int(batch_tile) if batch_tile is not None else tb_auto
    thw = int(hw_tile) if hw_tile is not None else thw_auto
    assert tb == B or tb % 8 == 0, "batch tile must be the full batch or a multiple of 8"
    assert thw == HW or thw % 128 == 0, "spatial tile must be full extent or a multiple of 128"

    grid = (pl.cdiv(B, tb), pl.cdiv(HW, thw))

    kernel = functools.partial(_linear_head_kernel, pool_type=pool_type,
                               hw_total=HW, hw_tile=thw)

    in_specs = [pl.BlockSpec((tb, C, thw), lambda i, k: (i, 0, k))]
    # Weight / bias: constant index_map -> DMA'd once, resident in VMEM across the grid.
    in_specs += [pl.BlockSpec(w.shape, lambda i, k: (0, 0)) for w in w_parts]
    in_specs += [pl.BlockSpec((1, num_classes), lambda i, k: (0, 0))]

    return pl.pallas_call(
        kernel,
        out_shape=jax.ShapeDtypeStruct((B, num_classes), jnp.float32),
        grid=grid,
        in_specs=in_specs,
        out_specs=pl.BlockSpec((tb, num_classes), lambda i, k: (i, 0)),
        scratch_shapes=[pltpu.VMEM((tb, C), jnp.float32),   # running sum
                        pltpu.VMEM((tb, C), jnp.float32)],  # running max
        compiler_params=pltpu.CompilerParams(
            dimension_semantics=("parallel", "arbitrary"),
            vmem_limit_bytes=32 * 1024 * 1024),
    )(x_flat, *w_parts, b2)


def _reference(x_nchw, weight, bias, pool_type):
    xf = x_nchw.astype(jnp.float32)
    avg = jnp.mean(xf, axis=(2, 3))
    mx = jnp.max(xf, axis=(2, 3))
    if pool_type == "avg":
        pooled = avg
    elif pool_type == "max":
        pooled = mx
    else:
        pooled = jnp.concatenate([avg, mx], axis=1)
    return pooled @ weight.astype(jnp.float32).T + bias.astype(jnp.float32)


if __name__ == "__main__":
    key = jax.random.PRNGKey(0)
    num_classes = 8

    # nn.Linear-style deterministic init: U(-1/sqrt(fan_in), 1/sqrt(fan_in)).
    def init_linear(kw, kb, in_f, out_f):
        bound = 1.0 / np.sqrt(in_f)
        w = jax.random.uniform(kw, (out_f, in_f), jnp.float32, -bound, bound)
        b = jax.random.uniform(kb, (out_f,), jnp.float32, -bound, bound)
        return w, b

    # Config 1: small head-like shape, auto tiling (single block, full batch/full HW).
    # Config 2: forces the tiled/pipelined path: 2 batch tiles (last one partial) and
    #           2 spatial tiles (last one masked, 144 % 128 != 0) to validate the
    #           accumulator + masking code paths.
    configs = [
        dict(shape=(2, 4, 16, 16), batch_tile=None, hw_tile=None),
        dict(shape=(12, 4, 12, 12), batch_tile=8, hw_tile=128),
    ]

    for cfg in configs:
        B, C, H, W = cfg["shape"]
        key, k_x, k_w, k_b, k_w2, k_b2 = jax.random.split(key, 6)
        x = jax.random.normal(k_x, (B, C, H, W), dtype=jnp.float32)
        w_avg, b_avg = init_linear(k_w, k_b, C, num_classes)          # 'avg'/'max' head
        w_cat, b_cat = init_linear(k_w2, k_b2, 2 * C, num_classes)    # 'cat' head

        for pool_type, (w, b) in (("avg", (w_avg, b_avg)),
                                  ("max", (w_avg, b_avg)),
                                  ("cat", (w_cat, b_cat))):
            out = linear_head_forward(x, w, b, pool_type=pool_type,
                                      batch_tile=cfg["batch_tile"],
                                      hw_tile=cfg["hw_tile"])
            out = jax.block_until_ready(out)
            ref = _reference(x, w, b, pool_type)
            np.testing.assert_allclose(np.asarray(out), np.asarray(ref),
                                       rtol=1e-5, atol=1e-5)

    print("KERNEL_OK")
</pallas_src>

<mosaic_0001>
module attributes {stable_mosaic.version = 11 : i64} {
  func.func @_linear_head_kernel(%arg0: i32, %arg1: i32, %arg2: memref<2x4x256xf32, #tpu.memory_space<vmem>>, %arg3: memref<8x4xf32, #tpu.memory_space<vmem>>, %arg4: memref<1x8xf32, #tpu.memory_space<vmem>>, %arg5: memref<2x8xf32, #tpu.memory_space<vmem>>, %arg6: memref<2x4xf32, #tpu.memory_space<vmem>>, %arg7: memref<2x4xf32, #tpu.memory_space<vmem>>) attributes {dimension_semantics = [#tpu.dimension_semantics<parallel>, #tpu.dimension_semantics<arbitrary>], iteration_bounds = array<i64: 1, 1>, scalar_prefetch = 0 : i64, scratch_operands = 2 : i64, tpu.core_type = #tpu.core_type<tc>, window_params = [{transform_indices = @transform_0, window_bounds = array<i64: 2, 4, 256>}, {pipeline_mode = #tpu.pipeline_mode<synchronous>, transform_indices = @transform_1, window_bounds = array<i64: 8, 4>}, {pipeline_mode = #tpu.pipeline_mode<synchronous>, transform_indices = @transform_2, window_bounds = array<i64: 1, 8>}, {transform_indices = @transform_3, window_bounds = array<i64: 2, 8>}]} {
    %c0_i32 = arith.constant 0 : i32
    %0 = arith.cmpi eq, %arg1, %c0_i32 : i32
    %1 = arith.extui %0 : i1 to i32
    %c0_i32_0 = arith.constant 0 : i32
    %2 = arith.cmpi ne, %1, %c0_i32_0 : i32
    scf.if %2 {
      %cst_9 = arith.constant 0.000000e+00 : f32
      %11 = vector.broadcast %cst_9 : f32 to vector<2x4xf32>
      %c0_10 = arith.constant 0 : index
      %c0_11 = arith.constant 0 : index
      %12 = vector.load %arg6[%c0_10, %c0_11] : memref<2x4xf32, #tpu.memory_space<vmem>>, vector<2x4xf32>
      tpu.vector_store %arg6[%c0_10, %c0_11], %11 {strides = array<i32>} : memref<2x4xf32, #tpu.memory_space<vmem>>, vector<2x4xf32>,
    } else {
    }
    %c0 = arith.constant 0 : index
    %c0_1 = arith.constant 0 : index
    %c0_2 = arith.constant 0 : index
    %3 = vector.load %arg2[%c0, %c0_1, %c0_2] : memref<2x4x256xf32, #tpu.memory_space<vmem>>, vector<2x4x256xf32>
    %c0_3 = arith.constant 0 : index
    %c0_4 = arith.constant 0 : index
    %4 = vector.load %arg6[%c0_3, %c0_4] : memref<2x4xf32, #tpu.memory_space<vmem>>, vector<2x4xf32>
    %cst = arith.constant dense<0.000000e+00> : vector<2x4xf32>
    %5 = vector.multi_reduction <add>, %3, %cst [2] : vector<2x4x256xf32> to vector<2x4xf32>
    %6 = arith.addf %4, %5 : vector<2x4xf32>
    %c0_5 = arith.constant 0 : index
    %c0_6 = arith.constant 0 : index
    %7 = vector.load %arg6[%c0_5, %c0_6] : memref<2x4xf32, #tpu.memory_space<vmem>>, vector<2x4xf32>
    tpu.vector_store %arg6[%c0_5, %c0_6], %6 {strides = array<i32>} : memref<2x4xf32, #tpu.memory_space<vmem>>, vector<2x4xf32>,
    %c0_i32_7 = arith.constant 0 : i32
    %8 = arith.cmpi eq, %arg1, %c0_i32_7 : i32
    %9 = arith.extui %8 : i1 to i32
    %c0_i32_8 = arith.constant 0 : i32
    %10 = arith.cmpi ne, %9, %c0_i32_8 : i32
    scf.if %10 {
      %c0_9 = arith.constant 0 : index
      %c0_10 = arith.constant 0 : index
      %11 = vector.load %arg6[%c0_9, %c0_10] : memref<2x4xf32, #tpu.memory_space<vmem>>, vector<2x4xf32>
      %cst_11 = arith.constant 3.906250e-03 : f32
      %12 = vector.broadcast %cst_11 : f32 to vector<2x4xf32>
      %13 = arith.mulf %11, %12 : vector<2x4xf32>
      %c0_12 = arith.constant 0 : index
      %c0_13 = arith.constant 0 : index
      %14 = vector.load %arg3[%c0_12, %c0_13] : memref<8x4xf32, #tpu.memory_space<vmem>>, vector<8x4xf32>
      %cst_14 = arith.constant dense<0.000000e+00> : vector<2x8xf32>
      %15 = tpu.matmul %13, %14, %cst_14 {dimension_numbers = #tpu.dot_dimension_numbers<[1], [1], [0], [0], [0, 0, 1, 0], [], []>} : vector<2x4xf32>, vector<8x4xf32>, vector<2x8xf32> -> vector<2x8xf32>
      %c0_15 = arith.constant 0 : index
      %c0_16 = arith.constant 0 : index
      %16 = vector.load %arg4[%c0_15, %c0_16] : memref<1x8xf32, #tpu.memory_space<vmem>>, vector<1x8xf32>
      %17 = vector.broadcast %16 : vector<1x8xf32> to vector<2x8xf32>
      %18 = arith.addf %15, %17 : vector<2x8xf32>
      %c0_17 = arith.constant 0 : index
      %c0_18 = arith.constant 0 : index
      %19 = vector.load %arg5[%c0_17, %c0_18] : memref<2x8xf32, #tpu.memory_space<vmem>>, vector<2x8xf32>
      tpu.vector_store %arg5[%c0_17, %c0_18], %18 {strides = array<i32>} : memref<2x8xf32, #tpu.memory_space<vmem>>, vector<2x8xf32>,
    } else {
    }
    return
  }
  func.func @transform_0(%arg0: i32, %arg1: i32) -> (i32, i32, i32) {
    %c0_i32 = arith.constant 0 : i32
    %c0_i32_0 = arith.constant 0 : i32
    return %arg0, %c0_i32, %arg1 : i32, i32, i32
  }
  func.func @transform_1(%arg0: i32, %arg1: i32) -> (i32, i32) {
    %c0_i32 = arith.constant 0 : i32
    %c0_i32_0 = arith.constant 0 : i32
    %c0_i32_1 = arith.constant 0 : i32
    return %c0_i32, %c0_i32_0 : i32, i32
  }
  func.func @transform_2(%arg0: i32, %arg1: i32) -> (i32, i32) {
    %c0_i32 = arith.constant 0 : i32
    %c0_i32_0 = arith.constant 0 : i32
    %c0_i32_1 = arith.constant 0 : i32
    return %c0_i32, %c0_i32_0 : i32, i32
  }
  func.func @transform_3(%arg0: i32, %arg1: i32) -> (i32, i32) {
    %c0_i32 = arith.constant 0 : i32
    %c0_i32_0 = arith.constant 0 : i32
    return %arg0, %c0_i32 : i32, i32
  }
}

</mosaic_0001>

<llo_original>
// kernel: tpu_custom_call.1
$region0: #{tpu_custom_call.1}
  #allocation0 [shape = 'u32[]', space=smem, size = 0x4, offset = 0x4, fixed_abs, tag = 'smem constant byte address 0x4 - core index']
  #allocation1 [shape = 'u32[144,128]{1,0:T(1,128)}', space=vmem, size = 0x12000, scoped, tag = 'internal scratch']
  #allocation2 [shape = 'f32[2,4]{1,0:T(2,128)}', space=vmem, size = 0x400, scoped, tag = 'scratch operand']
  #allocation3 [shape = 'f32[2,4]{1,0:T(2,128)}', space=vmem, size = 0x400, scoped, tag = 'scratch operand']
  %s0 = inlined_call_operand.hbm [shape: f32[2,4,256], index: 0, kind: input, shape index: {}]
  %s1 = inlined_call_operand.vmem [shape: f32[8,4], index: 1, kind: input, shape index: {}]
  %s2 = inlined_call_operand.vmem [shape: f32[1,8], index: 2, kind: input, shape index: {}]
  %s3 = inlined_call_operand.hbm [shape: f32[2,8], index: 3, kind: output, shape index: {}]
  %s4 = sld [smem:[#allocation0]]
  $region34: #{tpu_custom_call.1} parent=0
    _
  %s6 = ssub.s32 1, %s4
  %s7 = scalar_select 0, %s6, %s4
  $region1: #{tpu_custom_call.1} parent=0
    #allocation4 [shape = 'u8[8192]{0}', space=vmem, size = 0x2000, scoped, tag = 'input window, operand 0, single buffered']
    #allocation5 [shape = 's32[1]{0}', space=sflag, size = 0x4, scoped, tag = 'scoped memory for tpu_custom_call.1']
    #allocation6 [shape = 's32[1]{0}', space=sflag, size = 0x4, scoped, tag = 'scoped memory for tpu_custom_call.1']
    #allocation7 [shape = 'u8[1024]{0}', space=vmem, size = 0x400, scoped, tag = 'output window, operand 0, single buffered']
    %8 = vsyncpa [#allocation5], 0
    %9 = vsyncpa [#allocation6], 0
    // Predicated region
    $region2: #{tpu_custom_call.1} parent=1 // pred_check
      _
    $region3: #{tpu_custom_call.1} parent=1 // pred_check_branch
      %11 = sbr.rel (0) target = $region5
    $region4: #{tpu_custom_call.1} parent=1 // pred_region
      %s13 = ssub.s32 256, 256
      %14 = vsyncadd [#allocation5], %s13
      %s15 = sshll.u32 [#allocation4], 4
      %s16 = int_to_ptr.vmem [resolvable:$true] %s15
      %21 = dma.hbm_to_vmem [thread:$0]  %s0, 256, %s16, [#allocation5], 128, 128, 8
    $region5: #{tpu_custom_call.1} parent=1 // pred_fallthru
      _
    // Predicated region
    $region6: #{tpu_custom_call.1} parent=1 // pred_check
      _
    $region7: #{tpu_custom_call.1} parent=1 // pred_check_branch
      %23 = sbr.rel (0) target = $region9
    $region8: #{tpu_custom_call.1} parent=1 // pred_region
      _
    $region9: #{tpu_custom_call.1} parent=1 // pred_fallthru
      _
    // Predicated region
    $region10: #{tpu_custom_call.1} parent=1 // pred_check
      _
    $region11: #{tpu_custom_call.1} parent=1 // pred_check_branch
      %25 = sbr.rel (0) target = $region13
    $region12: #{tpu_custom_call.1} parent=1 // pred_region
      _
    $region13: #{tpu_custom_call.1} parent=1 // pred_fallthru
      _
    // Predicated region
    $region14: #{tpu_custom_call.1} parent=1 // pred_check
      _
    $region15: #{tpu_custom_call.1} parent=1 // pred_check_branch
      %27 = sbr.rel (0) target = $region17
    $region16: #{tpu_custom_call.1} parent=1 // pred_region
      %28 = dma.done [#allocation5], 256
    $region17: #{tpu_custom_call.1} parent=1 // pred_fallthru
      _
    %p29 = scmp.eq.s32.totalorder 0, 0
    // Predicated region
    $region18: #{tpu_custom_call.1} parent=1 // pred_check
      %p30 = pneg %p29
    $region19: #{tpu_custom_call.1} parent=1 // pred_check_branch
      %32 = sbr.rel (%p30) target = $region21
    $region20: #{tpu_custom_call.1} parent=1 // pred_region
      %vm33 = vcmask 25600
      %34 = vst.msk [vmem:[#allocation2] sm:$0x3] %vm33, 0.0
    $region21: #{tpu_custom_call.1} parent=1 // pred_fallthru
      _
    %v35 = vld [vmem:[#allocation4] sm:$0xff]
    %v36 = vld [vmem:[#allocation4 + $0x8] sm:$0xff]
    %v37 = vld [vmem:[#allocation2] sm:$0x3]
    %v40 = vcombine.high %v35, %v35
    %v41 = vcombine.high %v36, %v36
    %vm44 = vcmask 1043456
    %v45 = vsel %vm44, %v35, 0.0
    %v46 = vsel %vm44, %v40, 0.0
    %v47 = vadd.f32 %v45, %v46
    %48 = vadd.xlane.f32.xlu0 %v47
    %v49 = vpop.xlane.xlu0 %48
    %v50 = vsel %vm44, %v36, 0.0
    %v51 = vsel %vm44, %v41, 0.0
    %v52 = vadd.f32 %v50, %v51
    %53 = vadd.xlane.f32.xlu0 %v52
    %v54 = vpop.xlane.xlu0 %53
    %v57 = vlaneseq
    %v58 = vand.u32 %v57, 127
    %v59 = vlaneseq
    %v60 = vshrl.u32 %v59, 7
    %v61 = vsub.s32 %v58, %v60
    %v62 = vrot.slane %v49, %v61
    %v63 = vlaneseq
    %v64 = vshrl.u32 %v63, 7
    %v65 = vsub.s32 %v58, %v64
    %v66 = vrot.slane %v54, %v65
    %vm67 = vcmask 1041409
    %v68 = vsel %vm67, %v66, %v62
    %v70 = vadd.f32 %v37, %v68
    %vm71 = vcmask 25600
    %72 = vst.msk [vmem:[#allocation2] sm:$0x3] %vm71, %v70
    // Predicated region
    $region22: #{tpu_custom_call.1} parent=1 // pred_check
      %p73 = pneg %p29
    $region23: #{tpu_custom_call.1} parent=1 // pred_check_branch
      %75 = sbr.rel (%p73) target = $region25
    $region24: #{tpu_custom_call.1} parent=1 // pred_region
      %v76 = vld [vmem:[#allocation2] sm:$0x3]
      %v77 = vmul.f32 %v76, 0.00390625
      %v78 = vld [vmem:[%s1] sm:$0xff]
      %v79 = vld [vmem:[%s2] sm:$0x1]
      %v81 = vlaneseq
      %v82 = vshrl.u32 %v81, 7
      %v83 = vsub.s32 0, %v82
      %v84 = vrot.slane %v79, %v83
      %vm86 = vcmask 31744
      %v88 = vsel %vm86, %v77, 0
      %v91 = vsel %vm86, %v78, 0
      %93 = vmatprep.subr.mxu0 0.0
      %94 = vmatpush1.xpose.msra.mxu0 0.0
      %95 = vmatprep.subr.mxu0 0.0
      %96 = vmatpush1.xpose.msra.mxu0 0.0
      %97 = vmatprep.subr.mxu0 0.0
      %98 = vmatpush1.xpose.msra.mxu0 0.0
      %99 = vmatprep.subr.mxu0 0.0
      %100 = vmatpush1.xpose.msra.mxu0 0.0
      %101 = vmatprep.subr.mxu0 0.0
      %102 = vmatpush1.xpose.msra.mxu0 0.0
      %103 = vmatprep.subr.mxu0 0.0
      %104 = vmatpush1.xpose.msra.mxu0 0.0
      %105 = vmatprep.subr.mxu0 0.0
      %106 = vmatpush1.xpose.msra.mxu0 0.0
      %107 = vmatprep.subr.mxu0 0.0
      %108 = vmatpush1.xpose.msra.mxu0 0.0
      %109 = vmatprep.subr.mxu0 0.0
      %110 = vmatpush1.xpose.msra.mxu0 0.0
      %111 = vmatprep.subr.mxu0 0.0
      %112 = vmatpush1.xpose.msra.mxu0 0.0
      %113 = vmatprep.subr.mxu0 0.0
      %114 = vmatpush1.xpose.msra.mxu0 0.0
      %115 = vmatprep.subr.mxu0 0.0
      %116 = vmatpush1.xpose.msra.mxu0 0.0
      %117 = vmatprep.subr.mxu0 0.0
      %118 = vmatpush1.xpose.msra.mxu0 0.0
      %119 = vmatprep.subr.mxu0 0.0
      %120 = vmatpush1.xpose.msra.mxu0 0.0
      %121 = vmatprep.subr.mxu0 0.0
      %122 = vmatpush1.xpose.msra.mxu0 0.0
      %123 = vmatprep.subr.mxu0 0.0
      %124 = vmatpush1.xpose.msra.mxu0 %v91
      %125 = vmatprep.subr.mxu0 0.0
      %126 = vmatpush2.xpose.msra.mxu0 0.0
      %127 = vmatprep.subr.mxu0 0.0
      %128 = vmatpush2.xpose.msra.mxu0 0.0
      %129 = vmatprep.subr.mxu0 0.0
      %130 = vmatpush2.xpose.msra.mxu0 0.0
      %131 = vmatprep.subr.mxu0 0.0
      %132 = vmatpush2.xpose.msra.mxu0 0.0
      %133 = vmatprep.subr.mxu0 0.0
      %134 = vmatpush2.xpose.msra.mxu0 0.0
      %135 = vmatprep.subr.mxu0 0.0
      %136 = vmatpush2.xpose.msra.mxu0 0.0
      %137 = vmatprep.subr.mxu0 0.0
      %138 = vmatpush2.xpose.msra.mxu0 0.0
      %139 = vmatprep.subr.mxu0 0.0
      %140 = vmatpush2.xpose.msra.mxu0 0.0
      %141 = vmatprep.subr.mxu0 0.0
      %142 = vmatpush2.xpose.msra.mxu0 0.0
      %143 = vmatprep.subr.mxu0 0.0
      %144 = vmatpush2.xpose.msra.mxu0 0.0
      %145 = vmatprep.subr.mxu0 0.0
      %146 = vmatpush2.xpose.msra.mxu0 0.0
      %147 = vmatprep.subr.mxu0 0.0
      %148 = vmatpush2.xpose.msra.mxu0 0.0
      %149 = vmatprep.subr.mxu0 0.0
      %150 = vmatpush2.xpose.msra.mxu0 0.0
      %151 = vmatprep.subr.mxu0 0.0
      %152 = vmatpush2.xpose.msra.mxu0 0.0
      %153 = vmatprep.subr.mxu0 0.0
      %154 = vmatpush2.xpose.msra.mxu0 0.0
      %155 = vmatprep.subr.mxu0 0.0
      %156 = vmatpush2.xpose.msra.mxu0 0.0
      %157 = vmatprep.mubr.f32.mxu0 0.0
      %158 = vmatmul.mubr.f32.gmra.mxu0 %v88
      %v159 = vpop.f32.mrf.mxu0
      %v160 = vadd.f32 %v84, %v159
      %v161 = vpop.f32.mrf.mxu0
      %162 = vdwg.mxu0
      %vm163 = vcmask 58368
      %164 = vst.msk [vmem:[#allocation7] sm:$0x3] %vm163, %v160
    $region25: #{tpu_custom_call.1} parent=1 // pred_fallthru
      _
    // Predicated region
    $region26: #{tpu_custom_call.1} parent=1 // pred_check
      _
    $region27: #{tpu_custom_call.1} parent=1 // pred_check_branch
      %166 = sbr.rel (0) target = $region29
    $region28: #{tpu_custom_call.1} parent=1 // pred_region
      %s168 = ssub.s32 32, 32
      %169 = vsyncadd [#allocation6], %s168
      %s171 = sshll.u32 [#allocation7], 4
      %s172 = int_to_ptr.vmem [resolvable:$true] %s171
      %174 = dma.vmem_to_hbm [thread:$0]  %s172, 32, %s3, [#allocation6]
    $region29: #{tpu_custom_call.1} parent=1 // pred_fallthru
      _
    // Predicated region
    $region30: #{tpu_custom_call.1} parent=1 // pred_check
      _
    $region31: #{tpu_custom_call.1} parent=1 // pred_check_branch
      %176 = sbr.rel (0) target = $region33
    $region32: #{tpu_custom_call.1} parent=1 // pred_region
      %177 = dma.done [#allocation6], 32
    $region33: #{tpu_custom_call.1} parent=1 // pred_fallthru
      _
    %178 = vsyncpa [#allocation5], 1
    %179 = vsyncpa [#allocation6], 1

</llo_original>
